<compile_context>
chip_gen: v7x
topology: tpu7x:2x2x1
jax: 0.10.0
libtpu: 0.0.40
codegen_flags: <defaults>
</compile_context>

<pallas_src>
import functools

import jax
import jax.numpy as jnp
from jax.experimental import pallas as pl
from jax.experimental.pallas import tpu as pltpu


def _l_exp_kernel(x_ref, pw_ref, a_ref, out_ref, *, bt, ch, w, H, W, mean_val):
    # x_ref:  (bt, ch, w) f32     pw_ref: (w, W) f32      a_ref: (H, ch) f32
    # out_ref: (1, 8, 128) f32    per-block partial sum (broadcast over the tile)
    xv = x_ref[...]

    # Width pool (1/ps folded into pw): one big 2-D MXU matmul, M = bt*ch.
    t1 = jnp.dot(xv.reshape(bt * ch, w), pw_ref[...],
                 preferred_element_type=jnp.float32)            # (bt*ch, W)

    # Height pool + channel mean (1/(c*ps) folded into A), batched over samples.
    a_b = jnp.broadcast_to(a_ref[...], (bt, H, ch))
    pooled = jnp.einsum("bHk,bkX->bHX", a_b, t1.reshape(bt, ch, W),
                        preferred_element_type=jnp.float32)      # (bt, H, W)

    dev = pooled - jnp.float32(mean_val)
    sq = dev * dev
    partial = jnp.sum(jnp.sum(sq, axis=0), keepdims=True)        # (1, 1)
    out_ref[...] = jnp.broadcast_to(partial, (1, 8, 128))


def l_exp(x, patch_size, mean_val, *, block_budget_bytes=28 << 20,
          vmem_limit_bytes=48 << 20):
    """Pallas implementation of L_exp(patch_size, mean_val).forward(x). Returns a scalar."""
    b, c, h, w = x.shape
    ps = int(patch_size)
    assert h % ps == 0 and w % ps == 0, "h, w must be divisible by patch_size"
    H, W = h // ps, w // ps
    ch = c * h

    # Separable pooling weights with all normalization folded in:
    #   pw[x, X]        = 1/ps      if x // ps == X
    #   A[Y, ci*h + y]  = 1/(c*ps)  if y // ps == Y
    pw = ((jnp.arange(w)[:, None] // ps) == jnp.arange(W)[None, :]
          ).astype(jnp.float32) * (1.0 / ps)
    y_of_k = jnp.arange(ch) % h
    a_mat = (jnp.arange(H)[:, None] == (y_of_k // ps)[None, :]
             ).astype(jnp.float32) * (1.0 / (c * ps))

    # Batch tile: largest divisor of b whose padded, double-buffered VMEM
    # footprint (x block + intermediates + pool matrices) fits the budget.
    # Budget/limit chosen v7x-safe (64 MiB physical); v5e/v6e have headroom to
    # raise both if desired.
    rup = lambda v, m: -(-v // m) * m
    per_sample = rup(ch, 8) * rup(w, 128) * 4                       # padded x block
    per_sample_extra = (rup(ch, 8) * rup(W, 128)                    # t1
                        + rup(H, 8) * rup(ch, 128)                  # broadcast A
                        + rup(H, 8) * rup(W, 128)) * 4              # pooled
    const_bytes = 2 * (rup(w, 8) * rup(W, 128)
                       + rup(H, 8) * rup(ch, 128)) * 4              # pw + A (dbl-buf)
    bt = 1
    for d in range(b, 0, -1):
        if b % d == 0 and (2 * d * per_sample + d * per_sample_extra
                           + const_bytes) <= block_budget_bytes:
            bt = d
            break
    # TODO(synk): if even bt=1 exceeds the budget (very large images), add a
    # spatial row-tile grid axis with tile height a multiple of patch_size.

    grid_n = b // bt
    inv_count = 1.0 / float(b * H * W)                              # mean over (b,1,H,W)
    x3 = x.reshape(b, ch, w).astype(jnp.float32)

    kernel = functools.partial(_l_exp_kernel, bt=bt, ch=ch, w=w, H=H, W=W,
                               mean_val=float(mean_val))

    out = pl.pallas_call(
        kernel,
        out_shape=jax.ShapeDtypeStruct((grid_n, 8, 128), jnp.float32),
        grid_spec=pltpu.PrefetchScalarGridSpec(
            num_scalar_prefetch=0,
            grid=(grid_n,),
            in_specs=[
                pl.BlockSpec((bt, ch, w), lambda i: (i, 0, 0)),
                pl.BlockSpec((w, W), lambda i: (0, 0)),
                pl.BlockSpec((H, ch), lambda i: (0, 0)),
            ],
            out_specs=pl.BlockSpec((1, 8, 128), lambda i: (i, 0, 0)),
        ),
        compiler_params=pltpu.CompilerParams(
            dimension_semantics=("parallel",),
            vmem_limit_bytes=vmem_limit_bytes),
    )(x3, pw, a_mat)

    return jnp.sum(out[:, 0, 0]) * jnp.float32(inv_count)


def l_exp_ref(x, patch_size, mean_val):
    """Plain-JAX reference mirroring the PyTorch forward."""
    b, c, h, w = x.shape
    H, W = h // patch_size, w // patch_size
    m = jnp.mean(x, axis=1, keepdims=True)                          # (b, 1, h, w)
    pooled = m.reshape(b, 1, H, patch_size, W, patch_size).mean(axis=(3, 5))
    return jnp.mean((pooled - mean_val) ** 2)


if __name__ == "__main__":
    key = jax.random.PRNGKey(0)
    b, c, h, w = 2, 3, 16, 16
    patch_size, mean_val = 4, 0.6

    x = jax.random.uniform(key, (b, c, h, w), dtype=jnp.float32)

    out = jax.block_until_ready(l_exp(x, patch_size, mean_val))
    ref = jax.block_until_ready(l_exp_ref(x, patch_size, mean_val))

    assert out.shape == ()
    assert jnp.allclose(out, ref, atol=1e-6, rtol=1e-5), (
        f"mismatch: kernel={out} ref={ref}")
    print("KERNEL_OK")
</pallas_src>

<mosaic_0001>
module attributes {stable_mosaic.version = 11 : i64} {
  func.func @_l_exp_kernel(%arg0: i32, %arg1: memref<2x48x16xf32, #tpu.memory_space<vmem>>, %arg2: memref<16x4xf32, #tpu.memory_space<vmem>>, %arg3: memref<4x48xf32, #tpu.memory_space<vmem>>, %arg4: memref<1x8x128xf32, #tpu.memory_space<vmem>>) attributes {dimension_semantics = [#tpu.dimension_semantics<parallel>], iteration_bounds = array<i64: 1>, scalar_prefetch = 0 : i64, scratch_operands = 0 : i64, tpu.core_type = #tpu.core_type<tc>, window_params = [{transform_indices = @transform_0, window_bounds = array<i64: 2, 48, 16>}, {pipeline_mode = #tpu.pipeline_mode<synchronous>, transform_indices = @transform_1, window_bounds = array<i64: 16, 4>}, {pipeline_mode = #tpu.pipeline_mode<synchronous>, transform_indices = @transform_2, window_bounds = array<i64: 4, 48>}, {transform_indices = @transform_3, window_bounds = array<i64: 1, 8, 128>}]} {
    %c0 = arith.constant 0 : index
    %c0_0 = arith.constant 0 : index
    %c0_1 = arith.constant 0 : index
    %0 = vector.load %arg1[%c0, %c0_0, %c0_1] : memref<2x48x16xf32, #tpu.memory_space<vmem>>, vector<2x48x16xf32>
    %1 = vector.shape_cast %0 : vector<2x48x16xf32> to vector<96x16xf32>
    %c0_2 = arith.constant 0 : index
    %c0_3 = arith.constant 0 : index
    %2 = vector.load %arg2[%c0_2, %c0_3] : memref<16x4xf32, #tpu.memory_space<vmem>>, vector<16x4xf32>
    %cst = arith.constant dense<0.000000e+00> : vector<96x4xf32>
    %3 = tpu.matmul %1, %2, %cst {dimension_numbers = #tpu.dot_dimension_numbers<[1], [0], [0], [1], [0, 0, 1, 1], [], []>} : vector<96x16xf32>, vector<16x4xf32>, vector<96x4xf32> -> vector<96x4xf32>
    %c0_4 = arith.constant 0 : index
    %c0_5 = arith.constant 0 : index
    %4 = vector.load %arg3[%c0_4, %c0_5] : memref<4x48xf32, #tpu.memory_space<vmem>>, vector<4x48xf32>
    %5 = vector.shape_cast %4 : vector<4x48xf32> to vector<1x4x48xf32>
    %6 = vector.broadcast %5 : vector<1x4x48xf32> to vector<2x4x48xf32>
    %7 = vector.shape_cast %3 : vector<96x4xf32> to vector<2x48x4xf32>
    "tpu.trace_start"() <{level = 10 : i32, message = "bHk,bkX->bHX"}> : () -> ()
    %cst_6 = arith.constant dense<0.000000e+00> : vector<2x4x4xf32>
    %8 = tpu.matmul %6, %7, %cst_6 {dimension_numbers = #tpu.dot_dimension_numbers<[2], [1], [1], [2], [0, 0, 0, 1, 1, 2], [0], [0]>} : vector<2x4x48xf32>, vector<2x48x4xf32>, vector<2x4x4xf32> -> vector<2x4x4xf32>
    "tpu.trace_stop"() : () -> ()
    %cst_7 = arith.constant 6.000000e-01 : f32
    %9 = vector.broadcast %cst_7 : f32 to vector<2x4x4xf32>
    %10 = arith.subf %8, %9 : vector<2x4x4xf32>
    %11 = arith.mulf %10, %10 : vector<2x4x4xf32>
    %cst_8 = arith.constant dense<0.000000e+00> : vector<4x4xf32>
    %12 = vector.multi_reduction <add>, %11, %cst_8 [0] : vector<2x4x4xf32> to vector<4x4xf32>
    %13 = vector.shape_cast %12 : vector<4x4xf32> to vector<1x4x4xf32>
    %cst_9 = arith.constant dense<0.000000e+00> : vector<1xf32>
    %14 = vector.multi_reduction <add>, %13, %cst_9 [1, 2] : vector<1x4x4xf32> to vector<1xf32>
    %15 = vector.shape_cast %14 : vector<1xf32> to vector<1x1x1xf32>
    %16 = vector.extract %15[0, 0, 0] : f32 from vector<1x1x1xf32>
    %17 = vector.broadcast %16 : f32 to vector<1x1xf32>
    %18 = vector.shape_cast %17 : vector<1x1xf32> to vector<1x1x1xf32>
    %19 = vector.broadcast %18 : vector<1x1x1xf32> to vector<1x8x128xf32>
    %c0_10 = arith.constant 0 : index
    %c0_11 = arith.constant 0 : index
    %c0_12 = arith.constant 0 : index
    %20 = vector.load %arg4[%c0_10, %c0_11, %c0_12] : memref<1x8x128xf32, #tpu.memory_space<vmem>>, vector<1x8x128xf32>
    tpu.vector_store %arg4[%c0_10, %c0_11, %c0_12], %19 {strides = array<i32>} : memref<1x8x128xf32, #tpu.memory_space<vmem>>, vector<1x8x128xf32>,
    return
  }
  func.func @transform_0(%arg0: i32) -> (i32, i32, i32) {
    %c0_i32 = arith.constant 0 : i32
    %c0_i32_0 = arith.constant 0 : i32
    %c0_i32_1 = arith.constant 0 : i32
    return %arg0, %c0_i32, %c0_i32_0 : i32, i32, i32
  }
  func.func @transform_1(%arg0: i32) -> (i32, i32) {
    %c0_i32 = arith.constant 0 : i32
    %c0_i32_0 = arith.constant 0 : i32
    %c0_i32_1 = arith.constant 0 : i32
    return %c0_i32, %c0_i32_0 : i32, i32
  }
  func.func @transform_2(%arg0: i32) -> (i32, i32) {
    %c0_i32 = arith.constant 0 : i32
    %c0_i32_0 = arith.constant 0 : i32
    %c0_i32_1 = arith.constant 0 : i32
    return %c0_i32, %c0_i32_0 : i32, i32
  }
  func.func @transform_3(%arg0: i32) -> (i32, i32, i32) {
    %c0_i32 = arith.constant 0 : i32
    %c0_i32_0 = arith.constant 0 : i32
    %c0_i32_1 = arith.constant 0 : i32
    return %arg0, %c0_i32, %c0_i32_0 : i32, i32, i32
  }
}

</mosaic_0001>

<llo_original>
// kernel: tpu_custom_call.1
$region0: #{tpu_custom_call.1}
  #allocation0 [shape = 'u32[]', space=smem, size = 0x4, offset = 0x4, fixed_abs, tag = 'smem constant byte address 0x4 - core index']
  #allocation1 [shape = 'u32[144,128]{1,0:T(1,128)}', space=vmem, size = 0x12000, scoped, tag = 'internal scratch']
  %s0 = inlined_call_operand.vmem [shape: f32[2,48,16], index: 0, kind: input, shape index: {}]
  %s1 = inlined_call_operand.vmem [shape: f32[16,4], index: 1, kind: input, shape index: {}]
  %s2 = inlined_call_operand.vmem [shape: f32[4,48], index: 2, kind: input, shape index: {}]
  %s3 = inlined_call_operand.hbm [shape: f32[1,8,128], index: 3, kind: output, shape index: {}]
  %s4 = sld [smem:[#allocation0]]
  $region22: #{tpu_custom_call.1} parent=0
    _
  %s6 = ssub.s32 1, %s4
  %s7 = scalar_select 0, %s6, %s4
  $region1: #{tpu_custom_call.1} parent=0
    #allocation2 [shape = 'u8[4096]{0}', space=vmem, size = 0x1000, scoped, tag = 'output window, operand 0, single buffered']
    #allocation3 [shape = 's32[1]{0}', space=sflag, size = 0x4, scoped, tag = 'scoped memory for tpu_custom_call.1']
    %8 = vsyncpa [#allocation3], 0
    // Predicated region
    $region2: #{tpu_custom_call.1} parent=1 // pred_check
      _
    $region3: #{tpu_custom_call.1} parent=1 // pred_check_branch
      %10 = sbr.rel (0) target = $region5
    $region4: #{tpu_custom_call.1} parent=1 // pred_region
      _
    $region5: #{tpu_custom_call.1} parent=1 // pred_fallthru
      _
    // Predicated region
    $region6: #{tpu_custom_call.1} parent=1 // pred_check
      _
    $region7: #{tpu_custom_call.1} parent=1 // pred_check_branch
      %12 = sbr.rel (0) target = $region9
    $region8: #{tpu_custom_call.1} parent=1 // pred_region
      _
    $region9: #{tpu_custom_call.1} parent=1 // pred_fallthru
      _
    // Predicated region
    $region10: #{tpu_custom_call.1} parent=1 // pred_check
      _
    $region11: #{tpu_custom_call.1} parent=1 // pred_check_branch
      %14 = sbr.rel (0) target = $region13
    $region12: #{tpu_custom_call.1} parent=1 // pred_region
      _
    $region13: #{tpu_custom_call.1} parent=1 // pred_fallthru
      _
    %v15 = vld [vmem:[%s0] sm:$0xff]
    %v16 = vld [vmem:[%s0 + $0x8] sm:$0xff]
    %v17 = vld [vmem:[%s0 + $0x10] sm:$0xff]
    %v18 = vld [vmem:[%s0 + $0x18] sm:$0xff]
    %v19 = vld [vmem:[%s0 + $0x20] sm:$0xff]
    %v20 = vld [vmem:[%s0 + $0x28] sm:$0xff]
    %v21 = vld [vmem:[%s0 + $0x30] sm:$0xff]
    %v22 = vld [vmem:[%s0 + $0x38] sm:$0xff]
    %v23 = vld [vmem:[%s0 + $0x40] sm:$0xff]
    %v24 = vld [vmem:[%s0 + $0x48] sm:$0xff]
    %v25 = vld [vmem:[%s0 + $0x50] sm:$0xff]
    %v26 = vld [vmem:[%s0 + $0x58] sm:$0xff]
    %v27 = vld [vmem:[%s1] sm:$0xff]
    %v28 = vld [vmem:[%s1 + $0x8] sm:$0xff]
    %vm29 = vcmask 130048
    %v31 = vsel %vm29, %v15, 0
    %v34 = vsel %vm29, %v16, 0
    %v37 = vsel %vm29, %v17, 0
    %v40 = vsel %vm29, %v18, 0
    %v43 = vsel %vm29, %v19, 0
    %v46 = vsel %vm29, %v20, 0
    %v49 = vsel %vm29, %v21, 0
    %v52 = vsel %vm29, %v22, 0
    %v55 = vsel %vm29, %v23, 0
    %v58 = vsel %vm29, %v24, 0
    %v61 = vsel %vm29, %v25, 0
    %v64 = vsel %vm29, %v26, 0
    %66 = vmatprep.subr.mxu0 0.0
    %67 = vmatpush1.msra.mxu0 %v27
    %68 = vmatprep.subr.mxu0 0.0
    %69 = vmatpush1.msra.mxu0 %v28
    %70 = vmatprep.subr.mxu0 0.0
    %71 = vmatpush1.msra.mxu0 0.0
    %72 = vmatprep.subr.mxu0 0.0
    %73 = vmatpush1.msra.mxu0 0.0
    %74 = vmatprep.subr.mxu0 0.0
    %75 = vmatpush1.msra.mxu0 0.0
    %76 = vmatprep.subr.mxu0 0.0
    %77 = vmatpush1.msra.mxu0 0.0
    %78 = vmatprep.subr.mxu0 0.0
    %79 = vmatpush1.msra.mxu0 0.0
    %80 = vmatprep.subr.mxu0 0.0
    %81 = vmatpush1.msra.mxu0 0.0
    %82 = vmatprep.subr.mxu0 0.0
    %83 = vmatpush1.msra.mxu0 0.0
    %84 = vmatprep.subr.mxu0 0.0
    %85 = vmatpush1.msra.mxu0 0.0
    %86 = vmatprep.subr.mxu0 0.0
    %87 = vmatpush1.msra.mxu0 0.0
    %88 = vmatprep.subr.mxu0 0.0
    %89 = vmatpush1.msra.mxu0 0.0
    %90 = vmatprep.subr.mxu0 0.0
    %91 = vmatpush1.msra.mxu0 0.0
    %92 = vmatprep.subr.mxu0 0.0
    %93 = vmatpush1.msra.mxu0 0.0
    %94 = vmatprep.subr.mxu0 0.0
    %95 = vmatpush1.msra.mxu0 0.0
    %96 = vmatprep.subr.mxu0 0.0
    %97 = vmatpush1.msra.mxu0 0.0
    %98 = vmatprep.subr.mxu0 0.0
    %99 = vmatpush1.msra.mxu0 0.0
    %100 = vmatprep.subr.mxu0 0.0
    %101 = vmatpush1.msra.mxu0 0.0
    %102 = vmatprep.subr.mxu0 0.0
    %103 = vmatpush1.msra.mxu0 0.0
    %104 = vmatprep.subr.mxu0 0.0
    %105 = vmatpush1.msra.mxu0 0.0
    %106 = vmatprep.subr.mxu0 0.0
    %107 = vmatpush1.msra.mxu0 0.0
    %108 = vmatprep.subr.mxu0 0.0
    %109 = vmatpush1.msra.mxu0 0.0
    %110 = vmatprep.subr.mxu0 0.0
    %111 = vmatpush1.msra.mxu0 0.0
    %112 = vmatprep.subr.mxu0 0.0
    %113 = vmatpush1.msra.mxu0 0.0
    %114 = vmatprep.subr.mxu0 0.0
    %115 = vmatpush1.msra.mxu0 0.0
    %116 = vmatprep.subr.mxu0 0.0
    %117 = vmatpush1.msra.mxu0 0.0
    %118 = vmatprep.subr.mxu0 0.0
    %119 = vmatpush1.msra.mxu0 0.0
    %120 = vmatprep.subr.mxu0 0.0
    %121 = vmatpush1.msra.mxu0 0.0
    %122 = vmatprep.subr.mxu0 0.0
    %123 = vmatpush1.msra.mxu0 0.0
    %124 = vmatprep.subr.mxu0 0.0
    %125 = vmatpush1.msra.mxu0 0.0
    %126 = vmatprep.subr.mxu0 0.0
    %127 = vmatpush1.msra.mxu0 0.0
    %128 = vmatprep.subr.mxu0 0.0
    %129 = vmatpush1.msra.mxu0 0.0
    %130 = vmatprep.mubr.f32.mxu0 0.0
    %131 = vmatmul.mubr.f32.gmra.mrb[0].mxu0 %v31
    %v132 = vpop.f32.mrb[0].mxu0
    %v133 = vadd.f32 0.0, %v132
    %v134 = vpop.f32.mrb[0].mxu0
    %135 = vmatprep.mubr.f32.mxu0 0.0
    %136 = vmatmul.mubr.f32.gmra.mrb[0].mxu0 %v34
    %v137 = vpop.f32.mrb[0].mxu0
    %v138 = vadd.f32 0.0, %v137
    %v139 = vpop.f32.mrb[0].mxu0
    %140 = vmatprep.mubr.f32.mxu0 0.0
    %141 = vmatmul.mubr.f32.gmra.mrb[0].mxu0 %v37
    %v142 = vpop.f32.mrb[0].mxu0
    %v143 = vadd.f32 0.0, %v142
    %v144 = vpop.f32.mrb[0].mxu0
    %145 = vmatprep.mubr.f32.mxu0 0.0
    %146 = vmatmul.mubr.f32.gmra.mrb[0].mxu0 %v40
    %v147 = vpop.f32.mrb[0].mxu0
    %v148 = vadd.f32 0.0, %v147
    %v149 = vpop.f32.mrb[0].mxu0
    %150 = vmatprep.mubr.f32.mxu0 0.0
    %151 = vmatmul.mubr.f32.gmra.mrb[0].mxu0 %v43
    %v152 = vpop.f32.mrb[0].mxu0
    %v153 = vadd.f32 0.0, %v152
    %v154 = vpop.f32.mrb[0].mxu0
    %155 = vmatprep.mubr.f32.mxu0 0.0
    %156 = vmatmul.mubr.f32.gmra.mrb[0].mxu0 %v46
    %v157 = vpop.f32.mrb[0].mxu0
    %v158 = vadd.f32 0.0, %v157
    %v159 = vpop.f32.mrb[0].mxu0
    %160 = vmatprep.mubr.f32.mxu0 0.0
    %161 = vmatmul.mubr.f32.gmra.mrb[0].mxu0 %v49
    %v162 = vpop.f32.mrb[0].mxu0
    %v163 = vadd.f32 0.0, %v162
    %v164 = vpop.f32.mrb[0].mxu0
    %165 = vmatprep.mubr.f32.mxu0 0.0
    %166 = vmatmul.mubr.f32.gmra.mrb[0].mxu0 %v52
    %v167 = vpop.f32.mrb[0].mxu0
    %v168 = vadd.f32 0.0, %v167
    %v169 = vpop.f32.mrb[0].mxu0
    %170 = vmatprep.mubr.f32.mxu0 0.0
    %171 = vmatmul.mubr.f32.gmra.mrb[0].mxu0 %v55
    %v172 = vpop.f32.mrb[0].mxu0
    %v173 = vadd.f32 0.0, %v172
    %v174 = vpop.f32.mrb[0].mxu0
    %175 = vmatprep.mubr.f32.mxu0 0.0
    %176 = vmatmul.mubr.f32.gmra.mrb[0].mxu0 %v58
    %v177 = vpop.f32.mrb[0].mxu0
    %v178 = vadd.f32 0.0, %v177
    %v179 = vpop.f32.mrb[0].mxu0
    %180 = vmatprep.mubr.f32.mxu0 0.0
    %181 = vmatmul.mubr.f32.gmra.mrb[0].mxu0 %v61
    %v182 = vpop.f32.mrb[0].mxu0
    %v183 = vadd.f32 0.0, %v182
    %v184 = vpop.f32.mrb[0].mxu0
    %185 = vmatprep.mubr.f32.mxu0 0.0
    %186 = vmatmul.mubr.f32.gmra.mrb[0].mxu0 %v64
    %v187 = vpop.f32.mrb[0].mxu0
    %v188 = vadd.f32 0.0, %v187
    %v189 = vpop.f32.mrb[0].mxu0
    %190 = vdwg.mxu0
    %v191 = vld [vmem:[%s2] sm:$0xf]
    %vm192 = vcmask 392192
    %v194 = vsel %vm192, %v191, 0
    %196 = vmatprep.subr.mxu0 0.0
    %197 = vmatpush1.msra.mxu0 %v133
    %198 = vmatprep.subr.mxu0 0.0
    %199 = vmatpush1.msra.mxu0 %v138
    %200 = vmatprep.subr.mxu0 0.0
    %201 = vmatpush1.msra.mxu0 %v143
    %202 = vmatprep.subr.mxu0 0.0
    %203 = vmatpush1.msra.mxu0 %v148
    %204 = vmatprep.subr.mxu0 0.0
    %205 = vmatpush1.msra.mxu0 %v153
    %206 = vmatprep.subr.mxu0 0.0
    %207 = vmatpush1.msra.mxu0 %v158
    %208 = vmatprep.subr.mxu0 0.0
    %209 = vmatpush1.msra.mxu0 0.0
    %210 = vmatprep.subr.mxu0 0.0
    %211 = vmatpush1.msra.mxu0 0.0
    %212 = vmatprep.subr.mxu0 0.0
    %213 = vmatpush1.msra.mxu0 0.0
    %214 = vmatprep.subr.mxu0 0.0
    %215 = vmatpush1.msra.mxu0 0.0
    %216 = vmatprep.subr.mxu0 0.0
    %217 = vmatpush1.msra.mxu0 0.0
    %218 = vmatprep.subr.mxu0 0.0
    %219 = vmatpush1.msra.mxu0 0.0
    %220 = vmatprep.subr.mxu0 0.0
    %221 = vmatpush1.msra.mxu0 0.0
    %222 = vmatprep.subr.mxu0 0.0
    %223 = vmatpush1.msra.mxu0 0.0
    %224 = vmatprep.subr.mxu0 0.0
    %225 = vmatpush1.msra.mxu0 0.0
    %226 = vmatprep.subr.mxu0 0.0
    %227 = vmatpush1.msra.mxu0 0.0
    %228 = vmatprep.subr.mxu0 0.0
    %229 = vmatpush1.msra.mxu0 0.0
    %230 = vmatprep.subr.mxu0 0.0
    %231 = vmatpush1.msra.mxu0 0.0
    %232 = vmatprep.subr.mxu0 0.0
    %233 = vmatpush1.msra.mxu0 0.0
    %234 = vmatprep.subr.mxu0 0.0
    %235 = vmatpush1.msra.mxu0 0.0
    %236 = vmatprep.subr.mxu0 0.0
    %237 = vmatpush1.msra.mxu0 0.0
    %238 = vmatprep.subr.mxu0 0.0
    %239 = vmatpush1.msra.mxu0 0.0
    %240 = vmatprep.subr.mxu0 0.0
    %241 = vmatpush1.msra.mxu0 0.0
    %242 = vmatprep.subr.mxu0 0.0
    %243 = vmatpush1.msra.mxu0 0.0
    %244 = vmatprep.subr.mxu0 0.0
    %245 = vmatpush1.msra.mxu0 0.0
    %246 = vmatprep.subr.mxu0 0.0
    %247 = vmatpush1.msra.mxu0 0.0
    %248 = vmatprep.subr.mxu0 0.0
    %249 = vmatpush1.msra.mxu0 0.0
    %250 = vmatprep.subr.mxu0 0.0
    %251 = vmatpush1.msra.mxu0 0.0
    %252 = vmatprep.subr.mxu0 0.0
    %253 = vmatpush1.msra.mxu0 0.0
    %254 = vmatprep.subr.mxu0 0.0
    %255 = vmatpush1.msra.mxu0 0.0
    %256 = vmatprep.subr.mxu0 0.0
    %257 = vmatpush1.msra.mxu0 0.0
    %258 = vmatprep.subr.mxu0 0.0
    %259 = vmatpush1.msra.mxu0 0.0
    %260 = vmatprep.mubr.f32.mxu0 0.0
    %261 = vmatmul.mubr.f32.gmra.mrb[0].mxu0 %v194
    %v262 = vpop.f32.mrb[0].mxu0
    %v263 = vadd.f32 0.0, %v262
    %v264 = vpop.f32.mrb[0].mxu0
    %265 = vdwg.mxu0
    %266 = vmatprep.subr.mxu0 0.0
    %267 = vmatpush1.msra.mxu0 %v163
    %268 = vmatprep.subr.mxu0 0.0
    %269 = vmatpush1.msra.mxu0 %v168
    %270 = vmatprep.subr.mxu0 0.0
    %271 = vmatpush1.msra.mxu0 %v173
    %272 = vmatprep.subr.mxu0 0.0
    %273 = vmatpush1.msra.mxu0 %v178
    %274 = vmatprep.subr.mxu0 0.0
    %275 = vmatpush1.msra.mxu0 %v183
    %276 = vmatprep.subr.mxu0 0.0
    %277 = vmatpush1.msra.mxu0 %v188
    %278 = vmatprep.subr.mxu0 0.0
    %279 = vmatpush1.msra.mxu0 0.0
    %280 = vmatprep.subr.mxu0 0.0
    %281 = vmatpush1.msra.mxu0 0.0
    %282 = vmatprep.subr.mxu0 0.0
    %283 = vmatpush1.msra.mxu0 0.0
    %284 = vmatprep.subr.mxu0 0.0
    %285 = vmatpush1.msra.mxu0 0.0
    %286 = vmatprep.subr.mxu0 0.0
    %287 = vmatpush1.msra.mxu0 0.0
    %288 = vmatprep.subr.mxu0 0.0
    %289 = vmatpush1.msra.mxu0 0.0
    %290 = vmatprep.subr.mxu0 0.0
    %291 = vmatpush1.msra.mxu0 0.0
    %292 = vmatprep.subr.mxu0 0.0
    %293 = vmatpush1.msra.mxu0 0.0
    %294 = vmatprep.subr.mxu0 0.0
    %295 = vmatpush1.msra.mxu0 0.0
    %296 = vmatprep.subr.mxu0 0.0
    %297 = vmatpush1.msra.mxu0 0.0
    %298 = vmatprep.subr.mxu0 0.0
    %299 = vmatpush1.msra.mxu0 0.0
    %300 = vmatprep.subr.mxu0 0.0
    %301 = vmatpush1.msra.mxu0 0.0
    %302 = vmatprep.subr.mxu0 0.0
    %303 = vmatpush1.msra.mxu0 0.0
    %304 = vmatprep.subr.mxu0 0.0
    %305 = vmatpush1.msra.mxu0 0.0
    %306 = vmatprep.subr.mxu0 0.0
    %307 = vmatpush1.msra.mxu0 0.0
    %308 = vmatprep.subr.mxu0 0.0
    %309 = vmatpush1.msra.mxu0 0.0
    %310 = vmatprep.subr.mxu0 0.0
    %311 = vmatpush1.msra.mxu0 0.0
    %312 = vmatprep.subr.mxu0 0.0
    %313 = vmatpush1.msra.mxu0 0.0
    %314 = vmatprep.subr.mxu0 0.0
    %315 = vmatpush1.msra.mxu0 0.0
    %316 = vmatprep.subr.mxu0 0.0
    %317 = vmatpush1.msra.mxu0 0.0
    %318 = vmatprep.subr.mxu0 0.0
    %319 = vmatpush1.msra.mxu0 0.0
    %320 = vmatprep.subr.mxu0 0.0
    %321 = vmatpush1.msra.mxu0 0.0
    %322 = vmatprep.subr.mxu0 0.0
    %323 = vmatpush1.msra.mxu0 0.0
    %324 = vmatprep.subr.mxu0 0.0
    %325 = vmatpush1.msra.mxu0 0.0
    %326 = vmatprep.subr.mxu0 0.0
    %327 = vmatpush1.msra.mxu0 0.0
    %328 = vmatprep.subr.mxu0 0.0
    %329 = vmatpush1.msra.mxu0 0.0
    %330 = vmatprep.mubr.f32.mxu0 0.0
    %331 = vmatmul.mubr.f32.gmra.mrb[0].mxu0 %v194
    %v332 = vpop.f32.mrb[0].mxu0
    %v333 = vadd.f32 0.0, %v332
    %v334 = vpop.f32.mrb[0].mxu0
    %335 = vdwg.mxu0
    %v336 = vsub.f32 %v263, 0.6
    %v337 = vsub.f32 %v333, 0.6
    %v338 = vmul.f32 %v336, %v336
    %v339 = vmul.f32 %v337, %v337
    %vm340 = vcmask 27648
    %v341 = vsel %vm340, %v338, 0.0
    %v342 = vsel %vm340, %v339, 0.0
    %v343 = vadd.f32 %v341, %v342
    %v344 = vsel %vm340, %v343, 0.0
    %345 = vadd.xlane.f32.xlu0 %v344
    %v346 = vpop.xlane.xlu0 %345
    %v347 = vrot.slane %v346, 4
    %v348 = vadd.f32 %v346, %v347
    %v349 = vrot.slane %v348, 2
    %v350 = vadd.f32 %v348, %v349
    %v351 = vrot.slane %v350, 1
    %v352 = vadd.f32 %v350, %v351
    %s353 = vtos %v352
    %v354 = vstv %s353
    %355 = vst [vmem:[#allocation2] sm:$0xff] %v354
    // Predicated region
    $region14: #{tpu_custom_call.1} parent=1 // pred_check
      _
    $region15: #{tpu_custom_call.1} parent=1 // pred_check_branch
      %357 = sbr.rel (0) target = $region17
    $region16: #{tpu_custom_call.1} parent=1 // pred_region
      %s359 = ssub.s32 128, 128
      %360 = vsyncadd [#allocation3], %s359
      %s362 = sshll.u32 [#allocation2], 4
      %s363 = int_to_ptr.vmem [resolvable:$true] %s362
      %365 = dma.vmem_to_hbm [thread:$0]  %s363, 128, %s3, [#allocation3]
    $region17: #{tpu_custom_call.1} parent=1 // pred_fallthru
      _
    // Predicated region
    $region18: #{tpu_custom_call.1} parent=1 // pred_check
      _
    $region19: #{tpu_custom_call.1} parent=1 // pred_check_branch
      %367 = sbr.rel (0) target = $region21
    $region20: #{tpu_custom_call.1} parent=1 // pred_region
      %368 = dma.done [#allocation3], 128
    $region21: #{tpu_custom_call.1} parent=1 // pred_fallthru
      _
    %369 = vsyncpa [#allocation3], 1

</llo_original>
